<compile_context>
chip_gen: v5e
topology: v5e:2x2
jax: 0.10.0
libtpu: 0.0.40
codegen_flags: <defaults>
</compile_context>

<pallas_src>
import functools

import jax
import jax.numpy as jnp
from jax.experimental import pallas as pl
from jax.experimental.pallas import tpu as pltpu

PROJECTION_SIZE = 250


def _seq_attn_kernel(x_ref, y_ref, mask_ref, w_ref, b_ref, o_ref,
                     ybf_ref, yproj_t_ref):
    # x_ref     : (1, TQ, Hp)           y_ref   : (1, L2p, Hp)
    # mask_ref  : (1, 1, L2p) bf16      w_ref   : (Hp, Pp) bf16   b_ref: (1, Pp) f32
    # o_ref     : (1, TQ, Hp)
    # ybf_ref   : (L2p, Hp) bf16 scratch   -- y cached in bf16, once per batch elem
    # yproj_t_ref: (Pp, L2p) bf16 scratch  -- relu(y@W+b)^T, once per batch elem
    qi = pl.program_id(1)

    w = w_ref[...]                         # (Hp, Pp) bf16
    b = b_ref[...]                         # (1, Pp)  f32

    # Project + cache keys once per batch element; reused for every query tile.
    @pl.when(qi == 0)
    def _():
        y_bf = y_ref[0].astype(jnp.bfloat16)                       # (L2p, Hp)
        ybf_ref[...] = y_bf
        yp = jnp.dot(y_bf, w, preferred_element_type=jnp.float32) + b
        yp = jnp.maximum(yp, 0.0)                                  # (L2p, Pp) f32
        # Store transposed so the per-step scores dot is standard (M,K)x(K,N).
        yproj_t_ref[...] = yp.T.astype(jnp.bfloat16)               # (Pp, L2p)

    # TODO(synk): F.dropout(p=0.1) on the projections is a no-op in eval mode;
    # training-mode dropout is not emulated.

    x = x_ref[0].astype(jnp.bfloat16)                              # (TQ, Hp)
    xp = jnp.dot(x, w, preferred_element_type=jnp.float32) + b
    xp = jnp.maximum(xp, 0.0).astype(jnp.bfloat16)                 # (TQ, Pp)

    # scores = x_proj @ y_proj^T, NN-form on the MXU (y_proj pre-transposed).
    scores = jnp.dot(xp, yproj_t_ref[...],
                     preferred_element_type=jnp.float32)           # (TQ, L2p)
    # Additive padding mask, scaled in-kernel (free VPU slot under the MXU).
    scores = scores + mask_ref[0].astype(jnp.float32) * jnp.float32(-1e30)

    # Softmax over L2 in f32.
    m = jnp.max(scores, axis=-1, keepdims=True)
    e = jnp.exp(scores - m)
    denom = jnp.sum(e, axis=-1, keepdims=True)
    alpha = e * pl.reciprocal(denom, approx=True)                  # (TQ, L2p)

    # Weighted sum of values (values == y_key), from the cached bf16 copy.
    o_ref[0] = jnp.dot(alpha.astype(jnp.bfloat16), ybf_ref[...],
                       preferred_element_type=jnp.float32).astype(o_ref.dtype)


@functools.partial(jax.jit, static_argnames=("max_tq",))
def seq_attn_match(x, y_key, y_mask, w, b, *, max_tq=256):
    B, L1, H = x.shape
    _, L2, _ = y_key.shape
    P = w.shape[1]
    assert w.shape[0] == H and b.shape == (1, P)

    # --- Lane-dense padding: P, H, L2 up to multiples of 128 ------------------
    # relu(0 @ W + 0) == 0 for padded P columns; padded H columns of x/y/W are
    # zero; padded L2 rows are excluded via the mask, so results are unchanged.
    P_pad = pl.cdiv(P, 128) * 128
    H_pad = pl.cdiv(H, 128) * 128
    L2_pad = pl.cdiv(L2, 128) * 128

    if P_pad != P or H_pad != H:
        w = jnp.pad(w, ((0, H_pad - H), (0, P_pad - P)))
    if P_pad != P:
        b = jnp.pad(b, ((0, 0), (0, P_pad - P)))
    if H_pad != H:
        x = jnp.pad(x, ((0, 0), (0, 0), (0, H_pad - H)))
        y_key = jnp.pad(y_key, ((0, 0), (0, 0), (0, H_pad - H)))
    if L2_pad != L2:
        y_key = jnp.pad(y_key, ((0, 0), (0, L2_pad - L2), (0, 0)))
        y_mask = jnp.pad(y_mask, ((0, 0), (0, L2_pad - L2)), constant_values=1.0)

    w_bf16 = w.astype(jnp.bfloat16)
    b_f32 = b.astype(jnp.float32)
    # Raw 0/1 mask, bf16 (exact) to halve its DMA; scaled to -1e30 inside the kernel.
    mask_bf16 = y_mask.reshape(B, 1, L2_pad).astype(jnp.bfloat16)

    # Query tiling: caps live VMEM per grid step and fills the MXU M dimension.
    # (v6e with large L1 can use max_tq=512; v5e store-bound cases may prefer 128.)
    tq = min(max_tq, max(8, pl.cdiv(L1, 8) * 8))
    L1_pad = pl.cdiv(L1, tq) * tq
    if L1_pad != L1:
        x = jnp.pad(x, ((0, 0), (0, L1_pad - L1), (0, 0)))
    n_q = L1_pad // tq

    # --- VMEM budget: derive from the actual footprint, 2x margin ------------
    xb = x.dtype.itemsize
    yb = y_key.dtype.itemsize
    est = (
        2 * tq * H_pad * xb            # x block (double-buffered)
        + 2 * tq * H_pad * xb          # out block
        + 2 * L2_pad * H_pad * yb      # y block (qi-invariant, still 2-buffered)
        + 2 * L2_pad * 2               # mask block (bf16)
        + 2 * H_pad * P_pad * 2        # W (bf16)
        + 2 * P_pad * 4                # bias
        + L2_pad * H_pad * 2           # y bf16 scratch
        + P_pad * L2_pad * 2           # y_proj^T scratch
        + 4 * tq * L2_pad * 4          # scores / exp / alpha temporaries
        + 2 * tq * P_pad * 4           # x_proj temporaries
    )
    vmem_limit = int(min(max(2 * est, 32 * 1024 * 1024), 48 * 1024 * 1024))

    out = pl.pallas_call(
        _seq_attn_kernel,
        out_shape=jax.ShapeDtypeStruct((B, L1_pad, H_pad), x.dtype),
        grid_spec=pltpu.PrefetchScalarGridSpec(
            num_scalar_prefetch=0,
            grid=(B, n_q),
            in_specs=[
                pl.BlockSpec((1, tq, H_pad), lambda bi, qi: (bi, qi, 0)),   # x tile
                pl.BlockSpec((1, L2_pad, H_pad), lambda bi, qi: (bi, 0, 0)),  # y (resident over qi)
                pl.BlockSpec((1, 1, L2_pad), lambda bi, qi: (bi, 0, 0)),    # raw mask (bf16)
                pl.BlockSpec((H_pad, P_pad), lambda bi, qi: (0, 0)),        # W (shared, bf16)
                pl.BlockSpec((1, P_pad), lambda bi, qi: (0, 0)),            # bias (shared)
            ],
            out_specs=pl.BlockSpec((1, tq, H_pad), lambda bi, qi: (bi, qi, 0)),
            scratch_shapes=[
                pltpu.VMEM((L2_pad, H_pad), jnp.bfloat16),    # cached bf16 y
                pltpu.VMEM((P_pad, L2_pad), jnp.bfloat16),    # cached y_proj^T
            ],
        ),
        compiler_params=pltpu.CompilerParams(
            # Batch is independent (megacore-parallel); the query-tile axis must be
            # "arbitrary" because y_bf16 / y_proj^T are cached in scratch across it.
            dimension_semantics=("parallel", "arbitrary"),
            vmem_limit_bytes=vmem_limit,
        ),
    )(x, y_key, mask_bf16, w_bf16, b_f32)

    if L1_pad != L1 or H_pad != H:
        out = out[:, :L1, :H]
    return out


def _reference(x, y_key, y_mask, w, b):
    x_proj = jax.nn.relu(jnp.einsum("blh,hp->blp", x, w) + b)
    y_proj = jax.nn.relu(jnp.einsum("blh,hp->blp", y_key, w) + b)
    scores = jnp.einsum("bip,bjp->bij", x_proj, y_proj)
    scores = jnp.where(y_mask[:, None, :] > 0.5, -jnp.inf, scores)
    alpha = jax.nn.softmax(scores, axis=-1)
    return jnp.einsum("bij,bjh->bih", alpha, y_key)


if __name__ == "__main__":
    B, L1, L2, H = 2, 8, 8, 32
    P = min(H, PROJECTION_SIZE)  # nn.Linear(input_size, min(input_size, 250))

    key = jax.random.PRNGKey(0)
    kx, ky, kw, kb, km = jax.random.split(key, 5)

    x = jax.random.normal(kx, (B, L1, H), dtype=jnp.float32)
    y_key = jax.random.normal(ky, (B, L2, H), dtype=jnp.float32)

    # Deterministic Linear params (Kaiming-uniform-ish range like nn.Linear default).
    bound = 1.0 / (H ** 0.5)
    w = jax.random.uniform(kw, (H, P), minval=-bound, maxval=bound,
                           dtype=jnp.float32)   # stored as (in, out) = W^T
    b = jax.random.uniform(kb, (1, P), minval=-bound, maxval=bound,
                           dtype=jnp.float32)

    # Padding mask: last 2 positions of each sequence are padding.
    y_mask = jnp.zeros((B, L2), dtype=jnp.float32).at[:, -2:].set(1.0)

    out = seq_attn_match(x, y_key, y_mask, w, b)
    out = jax.block_until_ready(out)

    ref = _reference(x, y_key, y_mask, w, b)
    assert out.shape == (B, L1, H)
    # bf16 MXU operands + approximate reciprocal -> compare loosely vs f32 reference.
    assert jnp.allclose(out, ref, atol=8e-2, rtol=5e-2), "mismatch vs reference"

    print("KERNEL_OK")
</pallas_src>

<mosaic_0001>
module attributes {stable_mosaic.version = 11 : i64} {
  func.func @_seq_attn_kernel(%arg0: i32, %arg1: i32, %arg2: memref<1x8x128xf32, #tpu.memory_space<vmem>>, %arg3: memref<1x128x128xf32, #tpu.memory_space<vmem>>, %arg4: memref<1x1x128xbf16, #tpu.memory_space<vmem>>, %arg5: memref<128x128xbf16, #tpu.memory_space<vmem>>, %arg6: memref<1x128xf32, #tpu.memory_space<vmem>>, %arg7: memref<1x8x128xf32, #tpu.memory_space<vmem>>, %arg8: memref<128x128xbf16, #tpu.memory_space<vmem>>, %arg9: memref<128x128xbf16, #tpu.memory_space<vmem>>) attributes {dimension_semantics = [#tpu.dimension_semantics<parallel>, #tpu.dimension_semantics<arbitrary>], iteration_bounds = array<i64: 2, 1>, scalar_prefetch = 0 : i64, scratch_operands = 2 : i64, tpu.core_type = #tpu.core_type<tc>, window_params = [{transform_indices = @transform_0, window_bounds = array<i64: 1, 8, 128>}, {transform_indices = @transform_1, window_bounds = array<i64: 1, 128, 128>}, {transform_indices = @transform_2, window_bounds = array<i64: 1, 1, 128>}, {pipeline_mode = #tpu.pipeline_mode<synchronous>, transform_indices = @transform_3, window_bounds = array<i64: 128, 128>}, {pipeline_mode = #tpu.pipeline_mode<synchronous>, transform_indices = @transform_4, window_bounds = array<i64: 1, 128>}, {transform_indices = @transform_5, window_bounds = array<i64: 1, 8, 128>}]} {
    %c0 = arith.constant 0 : index
    %c0_0 = arith.constant 0 : index
    %0 = vector.load %arg5[%c0, %c0_0] : memref<128x128xbf16, #tpu.memory_space<vmem>>, vector<128x128xbf16>
    %c0_1 = arith.constant 0 : index
    %c0_2 = arith.constant 0 : index
    %1 = vector.load %arg6[%c0_1, %c0_2] : memref<1x128xf32, #tpu.memory_space<vmem>>, vector<1x128xf32>
    %c0_i32 = arith.constant 0 : i32
    %2 = arith.cmpi eq, %arg1, %c0_i32 : i32
    %3 = arith.extui %2 : i1 to i32
    %c0_i32_3 = arith.constant 0 : i32
    %4 = arith.cmpi ne, %3, %c0_i32_3 : i32
    scf.if %4 {
      %c0_23 = arith.constant 0 : index
      %c0_24 = arith.constant 0 : index
      %c0_25 = arith.constant 0 : index
      %39 = vector.load %arg3[%c0_23, %c0_24, %c0_25] : memref<1x128x128xf32, #tpu.memory_space<vmem>>, vector<1x128x128xf32>
      %40 = vector.shape_cast %39 : vector<1x128x128xf32> to vector<128x128xf32>
      %41 = arith.truncf %40 : vector<128x128xf32> to vector<128x128xbf16>
      %c0_26 = arith.constant 0 : index
      %c0_27 = arith.constant 0 : index
      %42 = vector.load %arg8[%c0_26, %c0_27] : memref<128x128xbf16, #tpu.memory_space<vmem>>, vector<128x128xbf16>
      tpu.vector_store %arg8[%c0_26, %c0_27], %41 {strides = array<i32>} : memref<128x128xbf16, #tpu.memory_space<vmem>>, vector<128x128xbf16>,
      %cst_28 = arith.constant dense<0.000000e+00> : vector<128x128xf32>
      %43 = tpu.matmul %41, %0, %cst_28 {dimension_numbers = #tpu.dot_dimension_numbers<[1], [0], [0], [1], [0, 0, 1, 1], [], []>} : vector<128x128xbf16>, vector<128x128xbf16>, vector<128x128xf32> -> vector<128x128xf32>
      %44 = vector.broadcast %1 : vector<1x128xf32> to vector<128x128xf32>
      %45 = arith.addf %43, %44 : vector<128x128xf32>
      %cst_29 = arith.constant 0.000000e+00 : f32
      %46 = vector.broadcast %cst_29 : f32 to vector<128x128xf32>
      %47 = arith.maximumf %45, %46 : vector<128x128xf32>
      %48 = tpu.transpose %47, [1, 0] : vector<128x128xf32> -> vector<128x128xf32>
      %49 = arith.truncf %48 : vector<128x128xf32> to vector<128x128xbf16>
      %c0_30 = arith.constant 0 : index
      %c0_31 = arith.constant 0 : index
      %50 = vector.load %arg9[%c0_30, %c0_31] : memref<128x128xbf16, #tpu.memory_space<vmem>>, vector<128x128xbf16>
      tpu.vector_store %arg9[%c0_30, %c0_31], %49 {strides = array<i32>} : memref<128x128xbf16, #tpu.memory_space<vmem>>, vector<128x128xbf16>,
    } else {
    }
    %c0_4 = arith.constant 0 : index
    %c0_5 = arith.constant 0 : index
    %c0_6 = arith.constant 0 : index
    %5 = vector.load %arg2[%c0_4, %c0_5, %c0_6] : memref<1x8x128xf32, #tpu.memory_space<vmem>>, vector<1x8x128xf32>
    %6 = vector.shape_cast %5 : vector<1x8x128xf32> to vector<8x128xf32>
    %7 = arith.truncf %6 : vector<8x128xf32> to vector<8x128xbf16>
    %cst = arith.constant dense<0.000000e+00> : vector<8x128xf32>
    %8 = tpu.matmul %7, %0, %cst {dimension_numbers = #tpu.dot_dimension_numbers<[1], [0], [0], [1], [0, 0, 1, 1], [], []>} : vector<8x128xbf16>, vector<128x128xbf16>, vector<8x128xf32> -> vector<8x128xf32>
    %9 = vector.broadcast %1 : vector<1x128xf32> to vector<8x128xf32>
    %10 = arith.addf %8, %9 : vector<8x128xf32>
    %cst_7 = arith.constant 0.000000e+00 : f32
    %11 = vector.broadcast %cst_7 : f32 to vector<8x128xf32>
    %12 = arith.maximumf %10, %11 : vector<8x128xf32>
    %13 = arith.truncf %12 : vector<8x128xf32> to vector<8x128xbf16>
    %c0_8 = arith.constant 0 : index
    %c0_9 = arith.constant 0 : index
    %14 = vector.load %arg9[%c0_8, %c0_9] : memref<128x128xbf16, #tpu.memory_space<vmem>>, vector<128x128xbf16>
    %cst_10 = arith.constant dense<0.000000e+00> : vector<8x128xf32>
    %15 = tpu.matmul %13, %14, %cst_10 {dimension_numbers = #tpu.dot_dimension_numbers<[1], [0], [0], [1], [0, 0, 1, 1], [], []>} : vector<8x128xbf16>, vector<128x128xbf16>, vector<8x128xf32> -> vector<8x128xf32>
    %c0_11 = arith.constant 0 : index
    %c0_12 = arith.constant 0 : index
    %c0_13 = arith.constant 0 : index
    %16 = vector.load %arg4[%c0_11, %c0_12, %c0_13] : memref<1x1x128xbf16, #tpu.memory_space<vmem>>, vector<1x1x128xbf16>
    %17 = vector.shape_cast %16 : vector<1x1x128xbf16> to vector<1x128xbf16>
    %18 = arith.extf %17 : vector<1x128xbf16> to vector<1x128xf32>
    %cst_14 = arith.constant -1.000000e+30 : f32
    %19 = vector.broadcast %cst_14 : f32 to vector<1x128xf32>
    %20 = arith.mulf %18, %19 : vector<1x128xf32>
    %21 = vector.broadcast %20 : vector<1x128xf32> to vector<8x128xf32>
    %22 = arith.addf %15, %21 : vector<8x128xf32>
    %cst_15 = arith.constant dense<0xFF800000> : vector<8xf32>
    %23 = vector.multi_reduction <maximumf>, %22, %cst_15 [1] : vector<8x128xf32> to vector<8xf32>
    %24 = vector.shape_cast %23 : vector<8xf32> to vector<8x1xf32>
    %25 = vector.broadcast %24 : vector<8x1xf32> to vector<8x128xf32>
    %26 = arith.subf %22, %25 : vector<8x128xf32>
    %27 = math.exp %26 : vector<8x128xf32>
    %cst_16 = arith.constant dense<0.000000e+00> : vector<8xf32>
    %28 = vector.multi_reduction <add>, %27, %cst_16 [1] : vector<8x128xf32> to vector<8xf32>
    %29 = vector.shape_cast %28 : vector<8xf32> to vector<8x1xf32>
    %30 = tpu.reciprocal %29 {approx = true} : vector<8x1xf32> -> vector<8x1xf32>
    %31 = vector.broadcast %30 : vector<8x1xf32> to vector<8x128xf32>
    %32 = arith.mulf %27, %31 : vector<8x128xf32>
    %33 = arith.truncf %32 : vector<8x128xf32> to vector<8x128xbf16>
    %c0_17 = arith.constant 0 : index
    %c0_18 = arith.constant 0 : index
    %34 = vector.load %arg8[%c0_17, %c0_18] : memref<128x128xbf16, #tpu.memory_space<vmem>>, vector<128x128xbf16>
    %cst_19 = arith.constant dense<0.000000e+00> : vector<8x128xf32>
    %35 = tpu.matmul %33, %34, %cst_19 {dimension_numbers = #tpu.dot_dimension_numbers<[1], [0], [0], [1], [0, 0, 1, 1], [], []>} : vector<8x128xbf16>, vector<128x128xbf16>, vector<8x128xf32> -> vector<8x128xf32>
    %c0_20 = arith.constant 0 : index
    %c0_21 = arith.constant 0 : index
    %c0_22 = arith.constant 0 : index
    %36 = vector.load %arg7[%c0_20, %c0_21, %c0_22] : memref<1x8x128xf32, #tpu.memory_space<vmem>>, vector<1x8x128xf32>
    %37 = vector.shape_cast %36 : vector<1x8x128xf32> to vector<8x128xf32>
    %38 = vector.shape_cast %35 : vector<8x128xf32> to vector<1x8x128xf32>
    tpu.vector_store %arg7[%c0_20, %c0_21, %c0_22], %38 {strides = array<i32>} : memref<1x8x128xf32, #tpu.memory_space<vmem>>, vector<1x8x128xf32>,
    return
  }
  func.func @transform_0(%arg0: i32, %arg1: i32) -> (i32, i32, i32) {
    %c0_i32 = arith.constant 0 : i32
    %c0_i32_0 = arith.constant 0 : i32
    return %arg0, %arg1, %c0_i32 : i32, i32, i32
  }
  func.func @transform_1(%arg0: i32, %arg1: i32) -> (i32, i32, i32) {
    %c0_i32 = arith.constant 0 : i32
    %c0_i32_0 = arith.constant 0 : i32
    %c0_i32_1 = arith.constant 0 : i32
    return %arg0, %c0_i32, %c0_i32_0 : i32, i32, i32
  }
  func.func @transform_2(%arg0: i32, %arg1: i32) -> (i32, i32, i32) {
    %c0_i32 = arith.constant 0 : i32
    %c0_i32_0 = arith.constant 0 : i32
    %c0_i32_1 = arith.constant 0 : i32
    return %arg0, %c0_i32, %c0_i32_0 : i32, i32, i32
  }
  func.func @transform_3(%arg0: i32, %arg1: i32) -> (i32, i32) {
    %c0_i32 = arith.constant 0 : i32
    %c0_i32_0 = arith.constant 0 : i32
    %c0_i32_1 = arith.constant 0 : i32
    return %c0_i32, %c0_i32_0 : i32, i32
  }
  func.func @transform_4(%arg0: i32, %arg1: i32) -> (i32, i32) {
    %c0_i32 = arith.constant 0 : i32
    %c0_i32_0 = arith.constant 0 : i32
    %c0_i32_1 = arith.constant 0 : i32
    return %c0_i32, %c0_i32_0 : i32, i32
  }
  func.func @transform_5(%arg0: i32, %arg1: i32) -> (i32, i32, i32) {
    %c0_i32 = arith.constant 0 : i32
    %c0_i32_0 = arith.constant 0 : i32
    return %arg0, %arg1, %c0_i32 : i32, i32, i32
  }
}

</mosaic_0001>

<llo_original>
// kernel: seq_attn_match.1
$region0: #{seq_attn_match.1}
  #allocation0 [shape = 'u32[]', space=smem, size = 0x4, offset = 0x4, fixed_abs, tag = 'smem constant byte address 0x4 - core index']
  #allocation1 [shape = 'u32[72,128]{1,0:T(1,128)}', space=vmem, size = 0x9000, scoped, tag = 'internal scratch']
  #allocation2 [shape = 'bf16[128,128]{1,0:T(8,128)(2,1)}', space=vmem, size = 0x8000, scoped, tag = 'scratch operand']
  #allocation3 [shape = 'bf16[128,128]{1,0:T(8,128)(2,1)}', space=vmem, size = 0x8000, scoped, tag = 'scratch operand']
  %s0 = inlined_call_operand.vmem [shape: f32[2,8,128], index: 0, kind: input, shape index: {}]
  %s1 = inlined_call_operand.vmem [shape: f32[2,128,128], index: 1, kind: input, shape index: {}]
  %s2 = inlined_call_operand.vmem [shape: bf16[2,1,128], index: 2, kind: input, shape index: {}]
  %s3 = inlined_call_operand.vmem [shape: bf16[128,128], index: 3, kind: input, shape index: {}]
  %s4 = inlined_call_operand.vmem [shape: f32[1,128], index: 4, kind: input, shape index: {}]
  %s5 = inlined_call_operand.hbm [shape: f32[2,8,128], index: 5, kind: output, shape index: {}]
  %s6 = sld [smem:[#allocation0]]
  $region57: #{seq_attn_match.1} parent=0
    _
  %s8 = ssub.s32 1, %s6
  %s9 = scalar_select 0, %s8, %s6
  $region1: #{seq_attn_match.1} parent=0
    #allocation4 [shape = 'u8[8192]{0}', space=vmem, size = 0x2000, scoped, tag = 'output window, operand 0']
    #allocation5 [shape = 's32[2]{0}', space=sflag, size = 0x8, scoped, tag = 'scoped memory for seq_attn_match.1']
    %10 = vsyncpa [#allocation5], 0
    %s11 = scalar_lea.sflag [#allocation5], 1
    %12 = vsyncpa %s11, 0
    loop: start=0, step=1, limit=4
    $region2: #{seq_attn_match.1} parent=1 // loop_pre_header
      _
    $region3: #{seq_attn_match.1} parent=1 // loop_header
      %s14 = sphi 0, %s18
      %p15 = scmp.ge.s32.totalorder %s14, 4
      %s21 = sphi 0, %s33
      %s22 = sphi 0, %s29
      %s23 = sphi 0, %s21
      %s24 = sphi 0, %s22
      %s25 = sphi 0, %s23
      %s26 = sphi 0, %s24
      %s38 = sphi 0, %s40
      %s41 = sphi 0, %s38
      %s42 = sphi 0, %s41
      %s58 = sphi 0, %s42
      %s64 = sphi 0, %s66
      %s67 = sphi 0, %s64
      %s68 = sphi 0, %s67
      %s84 = sphi 0, %s68
      %s90 = sphi 0, %s92
      %s93 = sphi 0, %s90
      %s94 = sphi 0, %s93
      %s110 = sphi 0, %s94
      %s114 = sphi 0, %s114
      %s116 = sphi 0, %s114
      %s117 = sphi 0, %s116
      %s131 = sphi 0, %s117
      %s135 = sphi 0, %s135
      %s137 = sphi 0, %s135
      %s138 = sphi 0, %s137
      %s152 = sphi 0, %s138
      %s160 = sphi 0, %s162
      %s163 = sphi 0, %s160
      %s164 = sphi 0, %s163
      %s180 = sphi 0, %s164
    $region4: #{seq_attn_match.1} parent=1 // loop_header_branch
      %17 = sbr.rel (%p15) target = $region8
    $region5: #{seq_attn_match.1} parent=1 // loop_body
      %s19 = ssub.s32 %s14, 1
      %s20 = ssub.s32 %s14, 2
      %s27 = sadd.s32 1, %s22
      %p28 = scmp.ge.s32.totalorder %s27, 1
      %s29 = scalar_select %p28, 0, %s27
      %s30 = sadd.s32 1, %s21
      %s31 = scalar_select %p28, %s30, %s21
      %p32 = scmp.ge.s32.totalorder %s31, 2
      %s33 = scalar_select %p32, 0, %s31
      %s34 = ssub.s32 %s21, %s33
      %s35 = ssub.s32 %s22, %s29
      %s36 = sor.u32 %s34, %s35
      %p37 = scmp.eq.s32.totalorder %s36, 0
      %s39 = sadd.s32 %s38, 1
      %s40 = scalar_select %p37, %s38, %s39
      %p43 = pneg %p37
      %p44 = scmp.eq.s32.totalorder %s14, 1
      %p45 = por %p43, %p44
      %p46 = scmp.ne.s32.totalorder %s38, %s41
      %p47 = scmp.eq.s32.totalorder %s14, 0
      %p48 = por %p46, %p47
      %p49 = scmp.ne.s32.totalorder %s38, %s41
      %p50 = scmp.eq.s32.totalorder %s19, 1
      %p51 = por %p49, %p50
      %p52 = scmp.ne.s32.totalorder %s41, %s42
      %p53 = scmp.eq.s32.totalorder %s19, 0
      %p54 = por %p52, %p53
      %p55 = scmp.ne.s32.totalorder %s41, %s42
      %p56 = scmp.eq.s32.totalorder %s20, 1
      %p57 = por %p55, %p56
      %p59 = scmp.ne.s32.totalorder %s42, %s58
      %p60 = scmp.eq.s32.totalorder %s20, 0
      %p61 = por %p59, %p60
      %s62 = ssub.s32 %s21, %s33
      %p63 = scmp.eq.s32.totalorder %s62, 0
      %s65 = sadd.s32 %s64, 1
      %s66 = scalar_select %p63, %s64, %s65
      %p69 = pneg %p63
      %p70 = scmp.eq.s32.totalorder %s14, 1
      %p71 = por %p69, %p70
      %p72 = scmp.ne.s32.totalorder %s64, %s67
      %p73 = scmp.eq.s32.totalorder %s14, 0
      %p74 = por %p72, %p73
      %p75 = scmp.ne.s32.totalorder %s64, %s67
      %p76 = scmp.eq.s32.totalorder %s19, 1
      %p77 = por %p75, %p76
      %p78 = scmp.ne.s32.totalorder %s67, %s68
      %p79 = scmp.eq.s32.totalorder %s19, 0
      %p80 = por %p78, %p79
      %p81 = scmp.ne.s32.totalorder %s67, %s68
      %p82 = scmp.eq.s32.totalorder %s20, 1
      %p83 = por %p81, %p82
      %p85 = scmp.ne.s32.totalorder %s68, %s84
      %p86 = scmp.eq.s32.totalorder %s20, 0
      %p87 = por %p85, %p86
      %s88 = ssub.s32 %s21, %s33
      %p89 = scmp.eq.s32.totalorder %s88, 0
      %s91 = sadd.s32 %s90, 1
      %s92 = scalar_select %p89, %s90, %s91
      %p95 = pneg %p89
      %p96 = scmp.eq.s32.totalorder %s14, 1
      %p97 = por %p95, %p96
      %p98 = scmp.ne.s32.totalorder %s90, %s93
      %p99 = scmp.eq.s32.totalorder %s14, 0
      %p100 = por %p98, %p99
      %p101 = scmp.ne.s32.totalorder %s90, %s93
      %p102 = scmp.eq.s32.totalorder %s19, 1
      %p103 = por %p101, %p102
      %p104 = scmp.ne.s32.totalorder %s93, %s94
      %p105 = scmp.eq.s32.totalorder %s19, 0
      %p106 = por %p104, %p105
      %p107 = scmp.ne.s32.totalorder %s93, %s94
      %p108 = scmp.eq.s32.totalorder %s20, 1
      %p109 = por %p107, %p108
      %p111 = scmp.ne.s32.totalorder %s94, %s110
      %p112 = scmp.eq.s32.totalorder %s20, 0
      %p113 = por %p111, %p112
      %s115 = sadd.s32 %s114, 1
      %p118 = scmp.eq.s32.totalorder %s14, 1
      %p119 = scmp.ne.s32.totalorder %s114, %s116
      %p120 = scmp.eq.s32.totalorder %s14, 0
      %p121 = por %p119, %p120
      %p122 = scmp.ne.s32.totalorder %s114, %s116
      %p123 = scmp.eq.s32.totalorder %s19, 1
      %p124 = por %p122, %p123
      %p125 = scmp.ne.s32.totalorder %s116, %s117
      %p126 = scmp.eq.s32.totalorder %s19, 0
      %p127 = por %p125, %p126
      %p128 = scmp.ne.s32.totalorder %s116, %s117
      %p129 = scmp.eq.s32.totalorder %s20, 1
      %p130 = por %p128, %p129
      %p132 = scmp.ne.s32.totalorder %s117, %s131
      %p133 = scmp.eq.s32.totalorder %s20, 0
      %p134 = por %p132, %p133
      %s136 = sadd.s32 %s135, 1
      %p139 = scmp.eq.s32.totalorder %s14, 1
      %p140 = scmp.ne.s32.totalorder %s135, %s137
      %p141 = scmp.eq.s32.totalorder %s14, 0
      %p142 = por %p140, %p141
      %p143 = scmp.ne.s32.totalorder %s135, %s137
      %p144 = scmp.eq.s32.totalorder %s19, 1
      %p145 = por %p143, %p144
      %p146 = scmp.ne.s32.totalorder %s137, %s138
      %p147 = scmp.eq.s32.totalorder %s19, 0
      %p148 = por %p146, %p147
      %p149 = scmp.ne.s32.totalorder %s137, %s138
      %p150 = scmp.eq.s32.totalorder %s20, 1
      %p151 = por %p149, %p150
      %p153 = scmp.ne.s32.totalorder %s138, %s152
      %p154 = scmp.eq.s32.totalorder %s20, 0
      %p155 = por %p153, %p154
      %s156 = ssub.s32 %s21, %s33
      %s157 = ssub.s32 %s22, %s29
      %s158 = sor.u32 %s156, %s157
      %p159 = scmp.eq.s32.totalorder %s158, 0
      %s161 = sadd.s32 %s160, 1
      %s162 = scalar_select %p159, %s160, %s161
      %p165 = pneg %p159
      %p166 = scmp.eq.s32.totalorder %s14, 1
      %p167 = por %p165, %p166
      %p168 = scmp.ne.s32.totalorder %s160, %s163
      %p169 = scmp.eq.s32.totalorder %s14, 0
      %p170 = por %p168, %p169
      %p171 = scmp.ne.s32.totalorder %s160, %s163
      %p172 = scmp.eq.s32.totalorder %s19, 1
      %p173 = por %p171, %p172
      %p174 = scmp.ne.s32.totalorder %s163, %s164
      %p175 = scmp.eq.s32.totalorder %s19, 0
      %p176 = por %p174, %p175
      %p177 = scmp.ne.s32.totalorder %s163, %s164
      %p178 = scmp.eq.s32.totalorder %s20, 1
      %p179 = por %p177, %p178
      %p181 = scmp.ne.s32.totalorder %s164, %s180
      %p182 = scmp.eq.s32.totalorder %s20, 0
      %p183 = por %p181, %p182
      %p184 = scmp.le.s32.totalorder 1, %s14
      %p185 = scmp.lt.s32.totalorder %s14, 3
      %p186 = pnand %p184, %p185
      %p187 = pneg %p186
      // Predicated region
      $region9: #{seq_attn_match.1} parent=5 // pred_check
        _
      $region10: #{seq_attn_match.1} parent=5 // pred_check_branch
        %189 = sbr.rel (%p186) target = $region12
      $region11: #{seq_attn_match.1} parent=5 // pred_region
        %s190 = ssub.s32 %s14, 1
        // Predicated region
        $region13: #{seq_attn_match.1} parent=11 // pred_check
          %p191 = pneg %p127
        $region14: #{seq_attn_match.1} parent=11 // pred_check_branch
          %193 = sbr.rel (%p191) target = $region16
        $region15: #{seq_attn_match.1} parent=11 // pred_region
          _
        $region16: #{seq_attn_match.1} parent=11 // pred_fallthru
          _
        // Predicated region
        $region17: #{seq_attn_match.1} parent=11 // pred_check
          %p194 = pneg %p148
        $region18: #{seq_attn_match.1} parent=11 // pred_check_branch
          %196 = sbr.rel (%p194) target = $region20
        $region19: #{seq_attn_match.1} parent=11 // pred_region
          _
        $region20: #{seq_attn_match.1} parent=11 // pred_fallthru
          _
      $region12: #{seq_attn_match.1} parent=5 // pred_fallthru
        _
      %p197 = scmp.lt.s32.totalorder %s14, 2
      // Predicated region
      $region21: #{seq_attn_match.1} parent=5 // pred_check
        %p198 = pneg %p197
      $region22: #{seq_attn_match.1} parent=5 // pred_check_branch
        %200 = sbr.rel (%p198) target = $region24
      $region23: #{seq_attn_match.1} parent=5 // pred_region
        // Predicated region
        $region25: #{seq_attn_match.1} parent=23 // pred_check
          %p201 = pneg %p48
        $region26: #{seq_attn_match.1} parent=23 // pred_check_branch
          %203 = sbr.rel (%p201) target = $region28
        $region27: #{seq_attn_match.1} parent=23 // pred_region
          %p204 = scmp.lt.s32.totalorder %s21, 1
          %s205 = scalar_select %p204, %s21, 1
          %p206 = scmp.lt.s32.totalorder %s22, 0
          %s207 = scalar_select %p206, %s22, 0
          %s208 = sadd.s32 %s207, %s205
          %s209 = smul.addr %s208, 8
          %s210 = scalar_lea.vmem %s0, %s209
        $region28: #{seq_attn_match.1} parent=23 // pred_fallthru
          _
        // Predicated region
        $region29: #{seq_attn_match.1} parent=23 // pred_check
          %p211 = pneg %p74
        $region30: #{seq_attn_match.1} parent=23 // pred_check_branch
          %213 = sbr.rel (%p211) target = $region32
        $region31: #{seq_attn_match.1} parent=23 // pred_region
          %p214 = scmp.lt.s32.totalorder %s21, 1
          %s215 = scalar_select %p214, %s21, 1
          %s216 = smul.addr %s215, 16
          %s217 = smul.addr %s216, 8
          %s218 = scalar_lea.vmem %s1, %s217
        $region32: #{seq_attn_match.1} parent=23 // pred_fallthru
          _
        // Predicated region
        $region33: #{seq_attn_match.1} parent=23 // pred_check
          %p219 = pneg %p100
        $region34: #{seq_attn_match.1} parent=23 // pred_check_branch
          %221 = sbr.rel (%p219) target = $region36
        $region35: #{seq_attn_match.1} parent=23 // pred_region
          %p222 = scmp.lt.s32.totalorder %s21, 1
          %s223 = scalar_select %p222, %s21, 1
          %s224 = scalar_lea.vmem %s2, %s223
        $region36: #{seq_attn_match.1} parent=23 // pred_fallthru
          _
      $region24: #{seq_attn_match.1} parent=5 // pred_fallthru
        _
      %p225 = scmp.le.s32.totalorder 1, %s14
      %p226 = scmp.lt.s32.totalorder %s14, 3
      %p227 = pnand %p225, %p226
      %p228 = pneg %p227
      // Predicated region
      $region37: #{seq_attn_match.1} parent=5 // pred_check
        _
      $region38: #{seq_attn_match.1} parent=5 // pred_check_branch
        %230 = sbr.rel (%p227) target = $region40
      $region39: #{seq_attn_match.1} parent=5 // pred_region
        %s231 = ssub.s32 %s14, 1
        %p232 = scmp.lt.s32.totalorder %s23, 1
        %s233 = scalar_select %p232, %s23, 1
        %p234 = scmp.lt.s32.totalorder %s24, 0
        %s235 = scalar_select %p234, %s24, 0
        %s236 = sadd.s32 %s235, %s233
        %s237 = smul.addr %s236, 8
        %s238 = scalar_lea.vmem %s0, %s237
        %p239 = pneg %p54
        %p240 = pneg %p51
        %p241 = scmp.lt.s32.totalorder %s23, 1
        %s242 = scalar_select %p241, %s23, 1
        %s243 = smul.addr %s242, 16
        %s244 = smul.addr %s243, 8
        %s245 = scalar_lea.vmem %s1, %s244
        %p246 = pneg %p80
        %p247 = pneg %p77
        %p248 = scmp.lt.s32.totalorder %s23, 1
        %s249 = scalar_select %p248, %s23, 1
        %s250 = scalar_lea.vmem %s2, %s249
        %p251 = pneg %p106
        %p252 = pneg %p103
        %p253 = pneg %p127
        %p254 = pneg %p124
        %p255 = pneg %p148
        %p256 = pneg %p145
        %p257 = pneg %p176
        %p258 = pneg %p173
        %s259 = sand.u32 %s163, 1
        %s260 = scalar_lea.sflag [#allocation5], %s259
        %s261 = sand.u32 %s163, 1
        %s262 = smul.addr %s261, 8
        %s263 = scalar_lea.vmem [#allocation4], %s262
        %p264 = scmp.lt.s32.totalorder %s23, 1
        %s265 = scalar_select %p264, %s23, 1
        %p266 = scmp.lt.s32.totalorder %s24, 0
        %s267 = scalar_select %p266, %s24, 0
        %s268 = sadd.s32 %s267, %s265
        %s269 = smul.addr %s268, 8
        %s270 = scalar_lea.vmem %s0, %s269
        %p271 = scmp.lt.s32.totalorder %s23, 1
        %s272 = scalar_select %p271, %s23, 1
        %s273 = smul.addr %s272, 16
        %s274 = smul.addr %s273, 8
        %s275 = scalar_lea.vmem %s1, %s274
        %p276 = scmp.lt.s32.totalorder %s23, 1
        %s277 = scalar_select %p276, %s23, 1
        %s278 = scalar_lea.vmem %s2, %s277
        %v279 = vld [vmem:[%s3] sm:$0xf]
        %v280 = vld [vmem:[%s3 + $0x4] sm:$0xf]
        %v281 = vld [vmem:[%s3 + $0x8] sm:$0xf]
        %v282 = vld [vmem:[%s3 + $0xc] sm:$0xf]
        %v283 = vld [vmem:[%s3 + $0x10] sm:$0xf]
        %v284 = vld [vmem:[%s3 + $0x14] sm:$0xf]
        %v285 = vld [vmem:[%s3 + $0x18] sm:$0xf]
        %v286 = vld [vmem:[%s3 + $0x1c] sm:$0xf]
        %v287 = vld [vmem:[%s3 + $0x20] sm:$0xf]
        %v288 = vld [vmem:[%s3 + $0x24] sm:$0xf]
        %v289 = vld [vmem:[%s3 + $0x28] sm:$0xf]
        %v290 = vld [vmem:[%s3 + $0x2c] sm:$0xf]
        %v291 = vld [vmem:[%s3 + $0x30] sm:$0xf]
        %v292 = vld [vmem:[%s3 + $0x34] sm:$0xf]
        %v293 = vld [vmem:[%s3 + $0x38] sm:$0xf]
        %v294 = vld [vmem:[%s3 + $0x3c] sm:$0xf]
        %v295 = vld [vmem:[%s4] sm:$0x1]
        %p296 = scmp.eq.s32.totalorder %s24, 0
        // Predicated region
        $region41: #{seq_attn_match.1} parent=39 // pred_check
          %p297 = pneg %p296
        $region42: #{seq_attn_match.1} parent=39 // pred_check_branch
          %299 = sbr.rel (%p297) target = $region44
        $region43: #{seq_attn_match.1} parent=39 // pred_region
          %v300 = vld [vmem:[%s275] sm:$0xff]
          %v301 = vld [vmem:[%s275 + $0x8] sm:$0xff]
          %v302 = vld [vmem:[%s275 + $0x10] sm:$0xff]
          %v303 = vld [vmem:[%s275 + $0x18] sm:$0xff]
          %v304 = vld [vmem:[%s275 + $0x20] sm:$0xff]
          %v305 = vld [vmem:[%s275 + $0x28] sm:$0xff]
          %v306 = vld [vmem:[%s275 + $0x30] sm:$0xff]
          %v307 = vld [vmem:[%s275 + $0x38] sm:$0xff]
          %v308 = vld [vmem:[%s275 + $0x40] sm:$0xff]
          %v309 = vld [vmem:[%s275 + $0x48] sm:$0xff]
          %v310 = vld [vmem:[%s275 + $0x50] sm:$0xff]
          %v311 = vld [vmem:[%s275 + $0x58] sm:$0xff]
          %v312 = vld [vmem:[%s275 + $0x60] sm:$0xff]
          %v313 = vld [vmem:[%s275 + $0x68] sm:$0xff]
          %v314 = vld [vmem:[%s275 + $0x70] sm:$0xff]
          %v315 = vld [vmem:[%s275 + $0x78] sm:$0xff]
          %v316 = vpack.c.bf16 %v300, %v300
          %v317 = vpack.c.bf16 %v301, %v301
          %v318 = vpack.c.bf16 %v302, %v302
          %v319 = vpack.c.bf16 %v303, %v303
          %v320 = vpack.c.bf16 %v304, %v304
          %v321 = vpack.c.bf16 %v305, %v305
          %v322 = vpack.c.bf16 %v306, %v306
          %v323 = vpack.c.bf16 %v307, %v307
          %v324 = vpack.c.bf16 %v308, %v308
          %v325 = vpack.c.bf16 %v309, %v309
          %v326 = vpack.c.bf16 %v310, %v310
          %v327 = vpack.c.bf16 %v311, %v311
          %v328 = vpack.c.bf16 %v312, %v312
          %v329 = vpack.c.bf16 %v313, %v313
          %v330 = vpack.c.bf16 %v314, %v314
          %v331 = vpack.c.bf16 %v315, %v315
          %332 = vst [vmem:[#allocation2] sm:$0xf] %v316
          %333 = vst [vmem:[#allocation2 + $0x4] sm:$0xf] %v317
          %334 = vst [vmem:[#allocation2 + $0x8] sm:$0xf] %v318
          %335 = vst [vmem:[#allocation2 + $0xc] sm:$0xf] %v319
          %336 = vst [vmem:[#allocation2 + $0x10] sm:$0xf] %v320
          %337 = vst [vmem:[#allocation2 + $0x14] sm:$0xf] %v321
          %338 = vst [vmem:[#allocation2 + $0x18] sm:$0xf] %v322
          %339 = vst [vmem:[#allocation2 + $0x1c] sm:$0xf] %v323
          %340 = vst [vmem:[#allocation2 + $0x20] sm:$0xf] %v324
          %341 = vst [vmem:[#allocation2 + $0x24] sm:$0xf] %v325
          %342 = vst [vmem:[#allocation2 + $0x28] sm:$0xf] %v326
          %343 = vst [vmem:[#allocation2 + $0x2c] sm:$0xf] %v327
          %344 = vst [vmem:[#allocation2 + $0x30] sm:$0xf] %v328
          %345 = vst [vmem:[#allocation2 + $0x34] sm:$0xf] %v329
          %346 = vst [vmem:[#allocation2 + $0x38] sm:$0xf] %v330
          %347 = vst [vmem:[#allocation2 + $0x3c] sm:$0xf] %v331
          %v349 = vperm.slane %v295, 0
          %v367 = vunpack.c.l.b16 %v316
          %v368 = vunpack.c.l.b16 %v317
          %v369 = vunpack.c.l.b16 %v318
          %v370 = vunpack.c.l.b16 %v319
          %v371 = vunpack.c.l.b16 %v320
          %v372 = vunpack.c.l.b16 %v321
          %v373 = vunpack.c.l.b16 %v322
          %v374 = vunpack.c.l.b16 %v323
          %v375 = vunpack.c.l.b16 %v324
          %v376 = vunpack.c.l.b16 %v325
          %v377 = vunpack.c.l.b16 %v326
          %v378 = vunpack.c.l.b16 %v327
          %v379 = vunpack.c.l.b16 %v328
          %v380 = vunpack.c.l.b16 %v329
          %v381 = vunpack.c.l.b16 %v330
          %v382 = vunpack.c.l.b16 %v331
          %v383 = vpack.c.b16 %v368, %v367
          %v384 = vpack.c.b16 %v370, %v369
          %v385 = vpack.c.b16 %v372, %v371
          %v386 = vpack.c.b16 %v374, %v373
          %v387 = vpack.c.b16 %v376, %v375
          %v388 = vpack.c.b16 %v378, %v377
          %v389 = vpack.c.b16 %v380, %v379
          %v390 = vpack.c.b16 %v382, %v381
          %v415 = vunpack.c.l.b16 %v279
          %v416 = vunpack.c.l.b16 %v280
          %v417 = vunpack.c.l.b16 %v281
          %v418 = vunpack.c.l.b16 %v282
          %v419 = vunpack.c.l.b16 %v283
          %v420 = vunpack.c.l.b16 %v284
          %v421 = vunpack.c.l.b16 %v285
          %v422 = vunpack.c.l.b16 %v286
          %v423 = vunpack.c.l.b16 %v287
          %v424 = vunpack.c.l.b16 %v288
          %v425 = vunpack.c.l.b16 %v289
          %v426 = vunpack.c.l.b16 %v290
          %v427 = vunpack.c.l.b16 %v291
          %v428 = vunpack.c.l.b16 %v292
          %v429 = vunpack.c.l.b16 %v293
          %v430 = vunpack.c.l.b16 %v294
          %v431 = vpack.c.b16 %v416, %v415
          %v432 = vpack.c.b16 %v418, %v417
          %v433 = vpack.c.b16 %v420, %v419
          %v434 = vpack.c.b16 %v422, %v421
          %v435 = vpack.c.b16 %v424, %v423
          %v436 = vpack.c.b16 %v426, %v425
          %v437 = vpack.c.b16 %v428, %v427
          %v438 = vpack.c.b16 %v430, %v429
          %447 = vmatpush.bf16.msra.mxu0 %v438
          %448 = vmatpush.bf16.msra.mxu0 %v437
          %449 = vmatpush.bf16.msra.mxu0 %v436
          %450 = vmatpush.bf16.msra.mxu0 %v435
          %451 = vmatpush.bf16.msra.mxu0 %v434
          %452 = vmatpush.bf16.msra.mxu0 %v433
          %453 = vmatpush.bf16.msra.mxu0 %v432
          %454 = vmatpush.bf16.msra.mxu0 %v431
          %455 = vmatmul.bf16.gmra.mxu0 %v383
          %v456 = vpop.f32.mrf.mxu0
          %v457 = vadd.f32 %v349, %v456
          %v458 = vpop.f32.mrf.mxu0
          %v459 = vadd.f32 %v349, %v458
          %460 = vmatmul.bf16.gmra.mxu0 %v384
          %v461 = vpop.f32.mrf.mxu0
          %v462 = vadd.f32 %v349, %v461
          %v463 = vpop.f32.mrf.mxu0
          %v464 = vadd.f32 %v349, %v463
          %465 = vmatmul.bf16.gmra.mxu0 %v385
          %v466 = vpop.f32.mrf.mxu0
          %v467 = vadd.f32 %v349, %v466
          %v468 = vpop.f32.mrf.mxu0
          %v469 = vadd.f32 %v349, %v468
          %470 = vmatmul.bf16.gmra.mxu0 %v386
          %v471 = vpop.f32.mrf.mxu0
          %v472 = vadd.f32 %v349, %v471
          %v473 = vpop.f32.mrf.mxu0
          %v474 = vadd.f32 %v349, %v473
          %475 = vmatmul.bf16.gmra.mxu0 %v387
          %v476 = vpop.f32.mrf.mxu0
          %v477 = vadd.f32 %v349, %v476
          %v478 = vpop.f32.mrf.mxu0
          %v479 = vadd.f32 %v349, %v478
          %480 = vmatmul.bf16.gmra.mxu0 %v388
          %v481 = vpop.f32.mrf.mxu0
          %v482 = vadd.f32 %v349, %v481
          %v483 = vpop.f32.mrf.mxu0
          %v484 = vadd.f32 %v349, %v483
          %485 = vmatmul.bf16.gmra.mxu0 %v389
          %v486 = vpop.f32.mrf.mxu0
          %v487 = vadd.f32 %v349, %v486
          %v488 = vpop.f32.mrf.mxu0
          %v489 = vadd.f32 %v349, %v488
          %490 = vmatmul.bf16.gmra.mxu0 %v390
          %v491 = vpop.f32.mrf.mxu0
          %v492 = vadd.f32 %v349, %v491
          %v493 = vpop.f32.mrf.mxu0
          %v494 = vadd.f32 %v349, %v493
          %495 = vdwg.mxu0
          %v496 = vmax.f32 %v457, 0.0
          %v497 = vmax.f32 %v459, 0.0
          %v498 = vmax.f32 %v462, 0.0
          %v499 = vmax.f32 %v464, 0.0
          %v500 = vmax.f32 %v467, 0.0
          %v501 = vmax.f32 %v469, 0.0
          %v502 = vmax.f32 %v472, 0.0
          %v503 = vmax.f32 %v474, 0.0
          %v504 = vmax.f32 %v477, 0.0
          %v505 = vmax.f32 %v479, 0.0
          %v506 = vmax.f32 %v482, 0.0
          %v507 = vmax.f32 %v484, 0.0
          %v508 = vmax.f32 %v487, 0.0
          %v509 = vmax.f32 %v489, 0.0
          %v510 = vmax.f32 %v492, 0.0
          %v511 = vmax.f32 %v494, 0.0
          %512 = vxpose.xlu0.b32.start [1/16] %v496, 128
          %513 = vxpose.xlu0.b32.cont [2/16] %v497, 128
          %514 = vxpose.xlu0.b32.cont [3/16] %v498, 128
          %515 = vxpose.xlu0.b32.cont [4/16] %v499, 128
          %516 = vxpose.xlu0.b32.cont [5/16] %v500, 128
          %517 = vxpose.xlu0.b32.cont [6/16] %v501, 128
          %518 = vxpose.xlu0.b32.cont [7/16] %v502, 128
          %519 = vxpose.xlu0.b32.cont [8/16] %v503, 128
          %520 = vxpose.xlu0.b32.cont [9/16] %v504, 128
          %521 = vxpose.xlu0.b32.cont [10/16] %v505, 128
          %522 = vxpose.xlu0.b32.cont [11/16] %v506, 128
          %523 = vxpose.xlu0.b32.cont [12/16] %v507, 128
          %524 = vxpose.xlu0.b32.cont [13/16] %v508, 128
          %525 = vxpose.xlu0.b32.cont [14/16] %v509, 128
          %526 = vxpose.xlu0.b32.cont [15/16] %v510, 128
          %527 = vxpose.xlu0.b32.end [16/16] %v511, 128
          %v528 = vpop.trf.xlu0
          %v529 = vpop.trf.xlu0
          %v530 = vpop.trf.xlu0
          %v531 = vpop.trf.xlu0
          %v532 = vpop.trf.xlu0
          %v533 = vpop.trf.xlu0
          %v534 = vpop.trf.xlu0
          %v535 = vpop.trf.xlu0
          %v536 = vpop.trf.xlu0
          %v537 = vpop.trf.xlu0
          %v538 = vpop.trf.xlu0
          %v539 = vpop.trf.xlu0
          %v540 = vpop.trf.xlu0
          %v541 = vpop.trf.xlu0
          %v542 = vpop.trf.xlu0
          %v543 = vpop.trf.xlu0
          %v544 = vpack.c.bf16 %v528, %v528
          %v545 = vpack.c.bf16 %v529, %v529
          %v546 = vpack.c.bf16 %v530, %v530
          %v547 = vpack.c.bf16 %v531, %v531
          %v548 = vpack.c.bf16 %v532, %v532
          %v549 = vpack.c.bf16 %v533, %v533
          %v550 = vpack.c.bf16 %v534, %v534
          %v551 = vpack.c.bf16 %v535, %v535
          %v552 = vpack.c.bf16 %v536, %v536
          %v553 = vpack.c.bf16 %v537, %v537
          %v554 = vpack.c.bf16 %v538, %v538
          %v555 = vpack.c.bf16 %v539, %v539
          %v556 = vpack.c.bf16 %v540, %v540
          %v557 = vpack.c.bf16 %v541, %v541
          %v558 = vpack.c.bf16 %v542, %v542
          %v559 = vpack.c.bf16 %v543, %v543
          %560 = vst [vmem:[#allocation3] sm:$0xf] %v544
          %561 = vst [vmem:[#allocation3 + $0x4] sm:$0xf] %v545
          %562 = vst [vmem:[#allocation3 + $0x8] sm:$0xf] %v546
          %563 = vst [vmem:[#allocation3 + $0xc] sm:$0xf] %v547
          %564 = vst [vmem:[#allocation3 + $0x10] sm:$0xf] %v548
          %565 = vst [vmem:[#allocation3 + $0x14] sm:$0xf] %v549
          %566 = vst [vmem:[#allocation3 + $0x18] sm:$0xf] %v550
          %567 = vst [vmem:[#allocation3 + $0x1c] sm:$0xf] %v551
          %568 = vst [vmem:[#allocation3 + $0x20] sm:$0xf] %v552
          %569 = vst [vmem:[#allocation3 + $0x24] sm:$0xf] %v553
          %570 = vst [vmem:[#allocation3 + $0x28] sm:$0xf] %v554
          %571 = vst [vmem:[#allocation3 + $0x2c] sm:$0xf] %v555
          %572 = vst [vmem:[#allocation3 + $0x30] sm:$0xf] %v556
          %573 = vst [vmem:[#allocation3 + $0x34] sm:$0xf] %v557
          %574 = vst [vmem:[#allocation3 + $0x38] sm:$0xf] %v558
          %575 = vst [vmem:[#allocation3 + $0x3c] sm:$0xf] %v559
        $region44: #{seq_attn_match.1} parent=39 // pred_fallthru
          _
        %v576 = vld [vmem:[%s270] sm:$0xff]
        %v577 = vpack.c.bf16 %v576, %v576
        %v579 = vperm.slane %v295, 0
        %v597 = vunpack.c.l.b16 %v279
        %v598 = vunpack.c.l.b16 %v280
        %v599 = vunpack.c.l.b16 %v281
        %v600 = vunpack.c.l.b16 %v282
        %v601 = vunpack.c.l.b16 %v283
        %v602 = vunpack.c.l.b16 %v284
        %v603 = vunpack.c.l.b16 %v285
        %v604 = vunpack.c.l.b16 %v286
        %v605 = vunpack.c.l.b16 %v287
        %v606 = vunpack.c.l.b16 %v288
        %v607 = vunpack.c.l.b16 %v289
        %v608 = vunpack.c.l.b16 %v290
        %v609 = vunpack.c.l.b16 %v291
        %v610 = vunpack.c.l.b16 %v292
        %v611 = vunpack.c.l.b16 %v293
        %v612 = vunpack.c.l.b16 %v294
        %v613 = vpack.c.b16 %v598, %v597
        %v614 = vpack.c.b16 %v600, %v599
        %v615 = vpack.c.b16 %v602, %v601
        %v616 = vpack.c.b16 %v604, %v603
        %v617 = vpack.c.b16 %v606, %v605
        %v618 = vpack.c.b16 %v608, %v607
        %v619 = vpack.c.b16 %v610, %v609
        %v620 = vpack.c.b16 %v612, %v611
        %629 = vmatpush.bf16.msra.mxu0 %v620
        %630 = vmatpush.bf16.msra.mxu0 %v619
        %631 = vmatpush.bf16.msra.mxu0 %v618
        %632 = vmatpush.bf16.msra.mxu0 %v617
        %633 = vmatpush.bf16.msra.mxu0 %v616
        %634 = vmatpush.bf16.msra.mxu0 %v615
        %635 = vmatpush.bf16.msra.mxu0 %v614
        %636 = vmatpush.bf16.msra.mxu0 %v613
        %637 = vmatmul.bf16.gmra.mxu0 %v577
        %v638 = vpop.f32.mrf.mxu0
        %v639 = vadd.f32 %v579, %v638
        %v640 = vpop.f32.mrf.mxu0
        %641 = vdwg.mxu0
        %v642 = vmax.f32 %v639, 0.0
        %v643 = vpack.c.bf16 %v642, %v642
        %v644 = vld [vmem:[#allocation3] sm:$0xf]
        %v645 = vld [vmem:[#allocation3 + $0x4] sm:$0xf]
        %v646 = vld [vmem:[#allocation3 + $0x8] sm:$0xf]
        %v647 = vld [vmem:[#allocation3 + $0xc] sm:$0xf]
        %v648 = vld [vmem:[#allocation3 + $0x10] sm:$0xf]
        %v649 = vld [vmem:[#allocation3 + $0x14] sm:$0xf]
        %v650 = vld [vmem:[#allocation3 + $0x18] sm:$0xf]
        %v651 = vld [vmem:[#allocation3 + $0x1c] sm:$0xf]
        %v652 = vld [vmem:[#allocation3 + $0x20] sm:$0xf]
        %v653 = vld [vmem:[#allocation3 + $0x24] sm:$0xf]
        %v654 = vld [vmem:[#allocation3 + $0x28] sm:$0xf]
        %v655 = vld [vmem:[#allocation3 + $0x2c] sm:$0xf]
        %v656 = vld [vmem:[#allocation3 + $0x30] sm:$0xf]
        %v657 = vld [vmem:[#allocation3 + $0x34] sm:$0xf]
        %v658 = vld [vmem:[#allocation3 + $0x38] sm:$0xf]
        %v659 = vld [vmem:[#allocation3 + $0x3c] sm:$0xf]
        %v660 = vld [vmem:[%s278] sm:$0x1]
        %v661 = vunpack.c.l.bf16 %v660
        %v662 = vmul.f32 %v661, -1e+30
        %v663 = vperm.slane %v662, 0
        %v680 = vunpack.c.l.b16 %v644
        %v681 = vunpack.c.l.b16 %v645
        %v682 = vunpack.c.l.b16 %v646
        %v683 = vunpack.c.l.b16 %v647
        %v684 = vunpack.c.l.b16 %v648
        %v685 = vunpack.c.l.b16 %v649
        %v686 = vunpack.c.l.b16 %v650
        %v687 = vunpack.c.l.b16 %v651
        %v688 = vunpack.c.l.b16 %v652
        %v689 = vunpack.c.l.b16 %v653
        %v690 = vunpack.c.l.b16 %v654
        %v691 = vunpack.c.l.b16 %v655
        %v692 = vunpack.c.l.b16 %v656
        %v693 = vunpack.c.l.b16 %v657
        %v694 = vunpack.c.l.b16 %v658
        %v695 = vunpack.c.l.b16 %v659
        %v696 = vpack.c.b16 %v681, %v680
        %v697 = vpack.c.b16 %v683, %v682
        %v698 = vpack.c.b16 %v685, %v684
        %v699 = vpack.c.b16 %v687, %v686
        %v700 = vpack.c.b16 %v689, %v688
        %v701 = vpack.c.b16 %v691, %v690
        %v702 = vpack.c.b16 %v693, %v692
        %v703 = vpack.c.b16 %v695, %v694
        %712 = vmatpush.bf16.msra.mxu0 %v703
        %713 = vmatpush.bf16.msra.mxu0 %v702
        %714 = vmatpush.bf16.msra.mxu0 %v701
        %715 = vmatpush.bf16.msra.mxu0 %v700
        %716 = vmatpush.bf16.msra.mxu0 %v699
        %717 = vmatpush.bf16.msra.mxu0 %v698
        %718 = vmatpush.bf16.msra.mxu0 %v697
        %719 = vmatpush.bf16.msra.mxu0 %v696
        %720 = vmatmul.bf16.gmra.mxu0 %v643
        %v721 = vpop.f32.mrf.mxu0
        %v722 = vadd.f32 %v663, %v721
        %v723 = vpop.f32.mrf.mxu0
        %724 = vdwg.mxu0
        %725 = vmax.xlane.f32.xlu0 %v722
        %v726 = vpop.xlane.xlu0 %725
        %v727 = vsub.f32 %v722, %v726
        %v728 = vmul.f32 %v727, 1.442695
        %v729 = vpow.pop %v728
        %730 = vadd.xlane.f32.xlu0 %v729
        %v731 = vpop.xlane.xlu0 %730
        %v732 = vrcp.pop %v731
        %v733 = vmul.f32 %v729, %v732
        %v734 = vpack.c.bf16 %v733, %v733
        %v735 = vld [vmem:[#allocation2] sm:$0xf]
        %v736 = vld [vmem:[#allocation2 + $0x4] sm:$0xf]
        %v737 = vld [vmem:[#allocation2 + $0x8] sm:$0xf]
        %v738 = vld [vmem:[#allocation2 + $0xc] sm:$0xf]
        %v739 = vld [vmem:[#allocation2 + $0x10] sm:$0xf]
        %v740 = vld [vmem:[#allocation2 + $0x14] sm:$0xf]
        %v741 = vld [vmem:[#allocation2 + $0x18] sm:$0xf]
        %v742 = vld [vmem:[#allocation2 + $0x1c] sm:$0xf]
        %v743 = vld [vmem:[#allocation2 + $0x20] sm:$0xf]
        %v744 = vld [vmem:[#allocation2 + $0x24] sm:$0xf]
        %v745 = vld [vmem:[#allocation2 + $0x28] sm:$0xf]
        %v746 = vld [vmem:[#allocation2 + $0x2c] sm:$0xf]
        %v747 = vld [vmem:[#allocation2 + $0x30] sm:$0xf]
        %v748 = vld [vmem:[#allocation2 + $0x34] sm:$0xf]
        %v749 = vld [vmem:[#allocation2 + $0x38] sm:$0xf]
        %v750 = vld [vmem:[#allocation2 + $0x3c] sm:$0xf]
        %v767 = vunpack.c.l.b16 %v735
        %v768 = vunpack.c.l.b16 %v736
        %v769 = vunpack.c.l.b16 %v737
        %v770 = vunpack.c.l.b16 %v738
        %v771 = vunpack.c.l.b16 %v739
        %v772 = vunpack.c.l.b16 %v740
        %v773 = vunpack.c.l.b16 %v741
        %v774 = vunpack.c.l.b16 %v742
        %v775 = vunpack.c.l.b16 %v743
        %v776 = vunpack.c.l.b16 %v744
        %v777 = vunpack.c.l.b16 %v745
        %v778 = vunpack.c.l.b16 %v746
        %v779 = vunpack.c.l.b16 %v747
        %v780 = vunpack.c.l.b16 %v748
        %v781 = vunpack.c.l.b16 %v749
        %v782 = vunpack.c.l.b16 %v750
        %v783 = vpack.c.b16 %v768, %v767
        %v784 = vpack.c.b16 %v770, %v769
        %v785 = vpack.c.b16 %v772, %v771
        %v786 = vpack.c.b16 %v774, %v773
        %v787 = vpack.c.b16 %v776, %v775
        %v788 = vpack.c.b16 %v778, %v777
        %v789 = vpack.c.b16 %v780, %v779
        %v790 = vpack.c.b16 %v782, %v781
        %799 = vmatpush.bf16.msra.mxu0 %v790
        %800 = vmatpush.bf16.msra.mxu0 %v789
        %801 = vmatpush.bf16.msra.mxu0 %v788
        %802 = vmatpush.bf16.msra.mxu0 %v787
        %803 = vmatpush.bf16.msra.mxu0 %v786
        %804 = vmatpush.bf16.msra.mxu0 %v785
        %805 = vmatpush.bf16.msra.mxu0 %v784
        %806 = vmatpush.bf16.msra.mxu0 %v783
        %807 = vmatmul.bf16.gmra.mxu0 %v734
        %v808 = vpop.f32.mrf.mxu0
        %v809 = vadd.f32 0.0, %v808
        %v810 = vpop.f32.mrf.mxu0
        %811 = vdwg.mxu0
        %812 = vst [vmem:[%s263] sm:$0xff] %v809
        %s813 = sand.u32 %s163, 1
        %s814 = scalar_lea.sflag [#allocation5], %s813
        %s815 = sand.u32 %s163, 1
        %s816 = smul.addr %s815, 8
        %s817 = scalar_lea.vmem [#allocation4], %s816
        // Predicated region
        $region45: #{seq_attn_match.1} parent=39 // pred_check
          %p818 = pneg %p173
        $region46: #{seq_attn_match.1} parent=39 // pred_check_branch
          %820 = sbr.rel (%p818) target = $region48
        $region47: #{seq_attn_match.1} parent=39 // pred_region
          %822 = vsyncadd %s814, 0
          %s823 = sadd.s32 %s24, %s23
          %s824 = smul.addr %s823, 8
          %s825 = scalar_lea.hbm %s5, %s824
          %s827 = sshll.u32 %s817, 4
          %s828 = int_to_ptr.vmem [resolvable:$true] %s827
          %s829 = sshll.u32 %s825, 4
          %s830 = int_to_ptr.hbm [resolvable:$true] %s829
          %832 = dma.vmem_to_hbm [thread:$0]  %s828, 128, %s830, %s814
        $region48: #{seq_attn_match.1} parent=39 // pred_fallthru
          _
      $region40: #{seq_attn_match.1} parent=5 // pred_fallthru
        _
      %p833 = scmp.le.s32.totalorder 2, %s14
      // Predicated region
      $region49: #{seq_attn_match.1} parent=5 // pred_check
        %p834 = pneg %p833
      $region50: #{seq_attn_match.1} parent=5 // pred_check_branch
        %836 = sbr.rel (%p834) target = $region52
      $region51: #{seq_attn_match.1} parent=5 // pred_region
        %s837 = ssub.s32 %s14, 2
        // Predicated region
        $region53: #{seq_attn_match.1} parent=51 // pred_check
          %p838 = pneg %p179
        $region54: #{seq_attn_match.1} parent=51 // pred_check_branch
          %840 = sbr.rel (%p838) target = $region56
        $region55: #{seq_attn_match.1} parent=51 // pred_region
          %s841 = sand.u32 %s164, 1
          %s842 = scalar_lea.sflag [#allocation5], %s841
          %s843 = sand.u32 %s164, 1
          %s844 = smul.addr %s843, 8
          %s845 = scalar_lea.vmem [#allocation4], %s844
          %847 = dma.done %s842, 128
        $region56: #{seq_attn_match.1} parent=51 // pred_fallthru
          _
      $region52: #{seq_attn_match.1} parent=5 // pred_fallthru
        _
    $region6: #{seq_attn_match.1} parent=1 // loop_footer
      %s18 = sadd.s32 1, %s14
    $region7: #{seq_attn_match.1} parent=1 // loop_footer_branch
      %13 = sbr.rel target = $region3
    $region8: #{seq_attn_match.1} parent=1 // loop_exit
      _
    %848 = vsyncpa [#allocation5], 1
    %s849 = scalar_lea.sflag [#allocation5], 1
    %850 = vsyncpa %s849, 1

</llo_original>
